<compile_context>
chip_gen: v6e
topology: v6e:2x2x1
jax: 0.10.0
libtpu: 0.0.40
codegen_flags: <defaults>
</compile_context>

<pallas_src>
import jax
import jax.numpy as jnp
from jax.experimental import pallas as pl
from jax.experimental.pallas import tpu as pltpu

# ----------------------------- config (small synthetic) -----------------------------
B = 2              # batch
S = 8              # sequence length
D = 32             # embed_dim
H = 4              # num_attention_heads
DH = D // H        # head_dim = 8
ROT = 4            # rotary_dim (even, <= head_dim)
INNER = 4 * D      # MLP inner dim = 128
BS = B * S         # rows after folding batch into the tile
EPS = 1e-5
SCALE = float(DH) ** 0.5            # scale_attn = sqrt(head_dim)
GELU_C = 0.7978845608028654         # sqrt(2/pi)
LOG2_S = S.bit_length() - 1
QKVW = ((3 * D + 127) // 128) * 128  # fused qkv slab width, padded to full 128 lanes (=128)
VECW = max(INNER, 128)               # packed vector-param slab width (=128)
assert S & (S - 1) == 0 and D % H == 0 and ROT % 2 == 0 and ROT <= DH and BS % 8 == 0


# ----------------------------- fused Pallas kernel -----------------------------------
def gptj_block_kernel(x_ref, wqkv_ref, wo_ref, win_ref, wout_ref, rope_ref, vec_ref, out_ref):
    f32, bf16 = jnp.float32, jnp.bfloat16
    x = x_ref[...]                                          # [BS, D] f32

    vec = vec_ref[...]                                      # [4, VECW] f32 packed params
    b_in = vec[0:1, 0:INNER]                                # [1, INNER]
    gamma = vec[1:2, 0:D]                                   # [1, D]
    beta = vec[2:3, 0:D]
    b_out = vec[3:4, 0:D]

    # ---- LayerNorm (ln_1), f32 ----
    mean = jnp.mean(x, axis=-1, keepdims=True)
    cen = x - mean
    var = jnp.mean(cen * cen, axis=-1, keepdims=True)
    ln = cen * jax.lax.rsqrt(var + EPS) * gamma + beta      # [BS, D] f32
    ln_bf = ln.astype(bf16)

    # ---- MLP (largest MXU work) ----
    h1 = jnp.dot(ln_bf, win_ref[...], preferred_element_type=f32) + b_in        # [BS, INNER]
    h1 = 0.5 * h1 * (1.0 + jnp.tanh(GELU_C * (h1 + 0.044715 * h1 * h1 * h1)))
    mlp = jnp.dot(h1.astype(bf16), wout_ref[...], preferred_element_type=f32) + b_out  # [BS, D]

    # ---- fused, lane-dense QKV projection: one [BS, D] @ [D, QKVW] matmul ----
    qkv = jnp.dot(ln_bf, wqkv_ref[...], preferred_element_type=f32)             # [BS, QKVW] f32

    # ---- GPT-J interleaved rotary on the whole qkv slab (v / pad columns are identity) ----
    rope = rope_ref[...]                                    # [3*BS, QKVW] f32
    cos_t = rope[0:BS, :]
    sin_a = rope[BS:2 * BS, :]      # multiplies neighbour d+1 (nonzero only at even rotary cols)
    sin_b = rope[2 * BS:3 * BS, :]  # multiplies neighbour d-1 (nonzero only at odd rotary cols)
    nxt = pltpu.roll(qkv, QKVW - 1, axis=1)   # np.roll convention: [..., d] = qkv[..., d+1]
    prv = pltpu.roll(qkv, 1, axis=1)          #                     [..., d] = qkv[..., d-1]
    qkv = qkv * cos_t + nxt * sin_a + prv * sin_b

    # ---- split into head-major [H, BS, DH] (batch-leading for the attention dots) ----
    def heads(base):
        return jnp.stack(
            [qkv[:, base + h * DH: base + (h + 1) * DH] for h in range(H)], axis=0)
    q = heads(0).astype(bf16)
    k = heads(D).astype(bf16)
    v = heads(2 * D).astype(bf16)

    # ---- causal attention: all heads in one batched dot, f32 softmax ----
    s = jax.lax.dot_general(q, k, (((2,), (2,)), ((0,), (0,))),
                            preferred_element_type=f32)     # [H, BS, BS]
    row = jax.lax.broadcasted_iota(jnp.int32, (BS, BS), 0)
    col = jax.lax.broadcasted_iota(jnp.int32, (BS, BS), 1)
    keep = ((row >> LOG2_S) == (col >> LOG2_S)) & (col <= row)   # block-causal (batch folded)
    s = jnp.where(keep[None], s, -65504.0) * (1.0 / SCALE)       # mask BEFORE scaling (ref order)
    s = s - jnp.max(s, axis=-1, keepdims=True)
    e = jnp.exp(s)
    denom = jnp.sum(e, axis=-1, keepdims=True)
    r = pl.reciprocal(denom, approx=True)
    r = r * (2.0 - denom * r)           # one Newton step restores ~f32 accuracy (EUP path kept)
    p = (e * r).astype(bf16)

    ctx = jax.lax.dot_general(p, v, (((2,), (1,)), ((0,), (0,))),
                              preferred_element_type=f32)    # [H, BS, DH]

    # ---- merge_heads (small lane-concat relayout) + ONE out_proj matmul ----
    ctx2d = jnp.concatenate([ctx[h] for h in range(H)], axis=-1)          # [BS, D]
    attn = jnp.dot(ctx2d.astype(bf16), wo_ref[...], preferred_element_type=f32)   # [BS, D]

    # ---- residual combine ----
    out_ref[...] = attn + mlp + x


# ----------------------------- host-side packing helpers -----------------------------
def _pack_qkv_weights(wq, wk, wv):
    """[D, QKVW] bf16: q|k|v columns concatenated, zero-padded to a full 128-lane slab."""
    w = jnp.concatenate([wq, wk, wv], axis=1)               # [D, 3D]
    w = jnp.pad(w, ((0, 0), (0, QKVW - 3 * D)))
    return w.astype(jnp.bfloat16)


def _pack_vec_params(gamma, beta, b_in, b_out):
    """One [4, VECW] f32 slab: rows = b_in | gamma | beta | b_out (zero-padded)."""
    def row(v):
        v = v.reshape(-1)
        return jnp.pad(v, (0, VECW - v.shape[0]))[None, :]
    return jnp.concatenate([row(b_in), row(gamma), row(beta), row(b_out)],
                           axis=0).astype(jnp.float32)


def _rope_tables():
    """cos / signed-sin tables [3*BS, QKVW]; identity (cos=1, sin=0) on v and pad columns."""
    pos = (jnp.arange(BS) % S).astype(jnp.float32)          # position of each folded row
    j = jnp.arange(QKVW)
    d = (j % D) % DH                                        # within-head dim
    inv_freq = 1.0 / (10000.0 ** (jnp.arange(0, ROT, 2, dtype=jnp.float32) / ROT))
    freq_j = inv_freq[jnp.clip(d // 2, 0, ROT // 2 - 1)]    # [QKVW]
    ang = pos[:, None] * freq_j[None, :]                    # [BS, QKVW]
    is_rot = ((j < 2 * D) & (d < ROT))[None, :]             # rotary applies to q and k only
    even = (d % 2 == 0)[None, :]
    cos_t = jnp.where(is_rot, jnp.cos(ang), 1.0)
    sin_v = jnp.where(is_rot, jnp.sin(ang), 0.0)
    sin_a = jnp.where(even, -sin_v, 0.0)                    # pairs with neighbour d+1
    sin_b = jnp.where(even, 0.0, sin_v)                     # pairs with neighbour d-1
    return jnp.concatenate([cos_t, sin_a, sin_b], axis=0).astype(jnp.float32)


# ----------------------------- wrapper ------------------------------------------------
def gptj_block(x, params):
    gamma, beta, wq, wk, wv, wo, w_in, b_in, w_out, b_out = params
    bf16 = jnp.bfloat16
    w_qkv = _pack_qkv_weights(wq, wk, wv)
    vec = _pack_vec_params(gamma, beta, b_in, b_out)
    rope = _rope_tables()
    # Batch and sequence folded into one resident [B*S, D] tile: single un-gridded invocation,
    # all 7 inputs live in VMEM (~80 KiB total at this size).
    out = pl.pallas_call(
        gptj_block_kernel,
        out_shape=jax.ShapeDtypeStruct((BS, D), jnp.float32),
    )(x.reshape(BS, D), w_qkv, wo.astype(bf16), w_in.astype(bf16), w_out.astype(bf16),
      rope, vec)
    return out.reshape(B, S, D)


# ----------------------------- pure-JAX reference for verification -------------------
def _ref_rotary_tables():
    pos = jnp.arange(S, dtype=jnp.float32)
    inv_freq = 1.0 / (10000.0 ** (jnp.arange(0, ROT, 2, dtype=jnp.float32) / ROT))
    ang = pos[:, None] * inv_freq[None, :]
    sin = jnp.repeat(jnp.sin(ang), 2, axis=-1)
    cos = jnp.repeat(jnp.cos(ang), 2, axis=-1)
    sin_h = jnp.concatenate([sin, jnp.zeros((S, DH - ROT), jnp.float32)], axis=-1)
    cos_h = jnp.concatenate([cos, jnp.ones((S, DH - ROT), jnp.float32)], axis=-1)
    return jnp.tile(cos_h, (1, H)), jnp.tile(sin_h, (1, H))     # [S, D]


def _rotate_every_two_ref(x):
    x_even = x[..., 0::2]
    x_odd = x[..., 1::2]
    return jnp.stack([-x_odd, x_even], axis=-1).reshape(x.shape)


def reference(x, params):
    gamma, beta, wq, wk, wv, wo, w_in, b_in, w_out, b_out = params
    cos_f, sin_f = _ref_rotary_tables()
    mean = x.mean(-1, keepdims=True)
    var = ((x - mean) ** 2).mean(-1, keepdims=True)
    ln = (x - mean) / jnp.sqrt(var + EPS) * gamma + beta
    q = ln @ wq
    k = ln @ wk
    v = ln @ wv
    q = q * cos_f + _rotate_every_two_ref(q) * sin_f
    k = k * cos_f + _rotate_every_two_ref(k) * sin_f
    qh = q.reshape(B, S, H, DH).transpose(0, 2, 1, 3)
    kh = k.reshape(B, S, H, DH).transpose(0, 2, 1, 3)
    vh = v.reshape(B, S, H, DH).transpose(0, 2, 1, 3)
    w = jnp.einsum("bhqd,bhkd->bhqk", qh, kh)
    mask = jnp.tril(jnp.ones((S, S), bool))
    w = jnp.where(mask[None, None], w, -65504.0) / SCALE
    w = jax.nn.softmax(w, axis=-1)
    a = jnp.einsum("bhqk,bhkd->bhqd", w, vh).transpose(0, 2, 1, 3).reshape(B, S, D)
    a = a @ wo
    h1 = ln @ w_in + b_in
    h1 = 0.5 * h1 * (1.0 + jnp.tanh(GELU_C * (h1 + 0.044715 * h1 ** 3)))
    h2 = h1 @ w_out + b_out
    return a + h2 + x


# ----------------------------- main ---------------------------------------------------
if __name__ == "__main__":
    key = jax.random.PRNGKey(0)
    ks = jax.random.split(key, 12)

    x = jax.random.normal(ks[0], (B, S, D), jnp.float32)

    # deterministic synthetic parameters (linear weights stored as [in, out] = W.T of PyTorch)
    gamma = 1.0 + 0.02 * jax.random.normal(ks[1], (1, D), jnp.float32)
    beta = 0.02 * jax.random.normal(ks[2], (1, D), jnp.float32)
    wq = 0.05 * jax.random.normal(ks[3], (D, D), jnp.float32)
    wk = 0.05 * jax.random.normal(ks[4], (D, D), jnp.float32)
    wv = 0.05 * jax.random.normal(ks[5], (D, D), jnp.float32)
    wo = 0.05 * jax.random.normal(ks[6], (D, D), jnp.float32)
    w_in = 0.05 * jax.random.normal(ks[7], (D, INNER), jnp.float32)
    b_in = 0.02 * jax.random.normal(ks[8], (1, INNER), jnp.float32)
    w_out = 0.05 * jax.random.normal(ks[9], (INNER, D), jnp.float32)
    b_out = 0.02 * jax.random.normal(ks[10], (1, D), jnp.float32)
    params = (gamma, beta, wq, wk, wv, wo, w_in, b_in, w_out, b_out)

    out = gptj_block(x, params)
    out = jax.block_until_ready(out)

    ref = reference(x, params)
    assert out.shape == (B, S, D)
    # Kernel feeds the MXU bf16 inputs (per perf review) while the reference is pure f32;
    # expected |err| ~ 1e-3, checked with a safe margin.
    err = float(jnp.max(jnp.abs(out - ref)))
    assert err < 2e-2, f"max abs err {err}"

    print("KERNEL_OK")
</pallas_src>

<mosaic_0001>
module attributes {stable_mosaic.version = 11 : i64} {
  func.func @gptj_block_kernel(%arg0: memref<16x32xf32, #tpu.memory_space<vmem>>, %arg1: memref<32x128xbf16, #tpu.memory_space<vmem>>, %arg2: memref<32x32xbf16, #tpu.memory_space<vmem>>, %arg3: memref<32x128xbf16, #tpu.memory_space<vmem>>, %arg4: memref<128x32xbf16, #tpu.memory_space<vmem>>, %arg5: memref<48x128xf32, #tpu.memory_space<vmem>>, %arg6: memref<4x128xf32, #tpu.memory_space<vmem>>, %arg7: memref<16x32xf32, #tpu.memory_space<vmem>>) attributes {dimension_semantics = [], scalar_prefetch = 0 : i64, scratch_operands = 0 : i64, tpu.core_type = #tpu.core_type<tc>} {
    %c0 = arith.constant 0 : index
    %c0_0 = arith.constant 0 : index
    %0 = vector.load %arg0[%c0, %c0_0] : memref<16x32xf32, #tpu.memory_space<vmem>>, vector<16x32xf32>
    %c0_1 = arith.constant 0 : index
    %c0_2 = arith.constant 0 : index
    %1 = vector.load %arg6[%c0_1, %c0_2] : memref<4x128xf32, #tpu.memory_space<vmem>>, vector<4x128xf32>
    %2 = vector.extract_strided_slice %1 {offsets = [0, 0], sizes = [1, 128], strides = [1, 1]} : vector<4x128xf32> to vector<1x128xf32>
    %3 = vector.extract_strided_slice %1 {offsets = [1, 0], sizes = [1, 32], strides = [1, 1]} : vector<4x128xf32> to vector<1x32xf32>
    %4 = vector.extract_strided_slice %1 {offsets = [2, 0], sizes = [1, 32], strides = [1, 1]} : vector<4x128xf32> to vector<1x32xf32>
    %5 = vector.extract_strided_slice %1 {offsets = [3, 0], sizes = [1, 32], strides = [1, 1]} : vector<4x128xf32> to vector<1x32xf32>
    %cst = arith.constant dense<0.000000e+00> : vector<16xf32>
    %6 = vector.multi_reduction <add>, %0, %cst [1] : vector<16x32xf32> to vector<16xf32>
    %7 = vector.shape_cast %6 : vector<16xf32> to vector<16x1xf32>
    %cst_3 = arith.constant 3.200000e+01 : f32
    %8 = vector.broadcast %cst_3 : f32 to vector<16x1xf32>
    %9 = arith.divf %7, %8 : vector<16x1xf32>
    %10 = vector.broadcast %9 : vector<16x1xf32> to vector<16x32xf32>
    %11 = arith.subf %0, %10 : vector<16x32xf32>
    %12 = arith.mulf %11, %11 : vector<16x32xf32>
    %cst_4 = arith.constant dense<0.000000e+00> : vector<16xf32>
    %13 = vector.multi_reduction <add>, %12, %cst_4 [1] : vector<16x32xf32> to vector<16xf32>
    %14 = vector.shape_cast %13 : vector<16xf32> to vector<16x1xf32>
    %cst_5 = arith.constant 3.200000e+01 : f32
    %15 = vector.broadcast %cst_5 : f32 to vector<16x1xf32>
    %16 = arith.divf %14, %15 : vector<16x1xf32>
    %cst_6 = arith.constant 9.99999974E-6 : f32
    %17 = vector.broadcast %cst_6 : f32 to vector<16x1xf32>
    %18 = arith.addf %16, %17 : vector<16x1xf32>
    %19 = math.rsqrt %18 : vector<16x1xf32>
    %20 = vector.broadcast %19 : vector<16x1xf32> to vector<16x32xf32>
    %21 = arith.mulf %11, %20 : vector<16x32xf32>
    %22 = vector.broadcast %3 : vector<1x32xf32> to vector<16x32xf32>
    %23 = arith.mulf %21, %22 : vector<16x32xf32>
    %24 = vector.broadcast %4 : vector<1x32xf32> to vector<16x32xf32>
    %25 = arith.addf %23, %24 : vector<16x32xf32>
    %26 = arith.truncf %25 : vector<16x32xf32> to vector<16x32xbf16>
    %c0_7 = arith.constant 0 : index
    %c0_8 = arith.constant 0 : index
    %27 = vector.load %arg3[%c0_7, %c0_8] : memref<32x128xbf16, #tpu.memory_space<vmem>>, vector<32x128xbf16>
    %cst_9 = arith.constant dense<0.000000e+00> : vector<16x128xf32>
    %28 = tpu.matmul %26, %27, %cst_9 {dimension_numbers = #tpu.dot_dimension_numbers<[1], [0], [0], [1], [0, 0, 1, 1], [], []>} : vector<16x32xbf16>, vector<32x128xbf16>, vector<16x128xf32> -> vector<16x128xf32>
    %29 = vector.broadcast %2 : vector<1x128xf32> to vector<16x128xf32>
    %30 = arith.addf %28, %29 : vector<16x128xf32>
    %cst_10 = arith.constant 5.000000e-01 : f32
    %31 = vector.broadcast %cst_10 : f32 to vector<16x128xf32>
    %32 = arith.mulf %31, %30 : vector<16x128xf32>
    %cst_11 = arith.constant 4.471500e-02 : f32
    %33 = vector.broadcast %cst_11 : f32 to vector<16x128xf32>
    %34 = arith.mulf %33, %30 : vector<16x128xf32>
    %35 = arith.mulf %34, %30 : vector<16x128xf32>
    %36 = arith.mulf %35, %30 : vector<16x128xf32>
    %37 = arith.addf %30, %36 : vector<16x128xf32>
    %cst_12 = arith.constant 0.797884583 : f32
    %38 = vector.broadcast %cst_12 : f32 to vector<16x128xf32>
    %39 = arith.mulf %38, %37 : vector<16x128xf32>
    %40 = math.tanh %39 : vector<16x128xf32>
    %cst_13 = arith.constant 1.000000e+00 : f32
    %41 = vector.broadcast %cst_13 : f32 to vector<16x128xf32>
    %42 = arith.addf %41, %40 : vector<16x128xf32>
    %43 = arith.mulf %32, %42 : vector<16x128xf32>
    %44 = arith.truncf %43 : vector<16x128xf32> to vector<16x128xbf16>
    %c0_14 = arith.constant 0 : index
    %c0_15 = arith.constant 0 : index
    %45 = vector.load %arg4[%c0_14, %c0_15] : memref<128x32xbf16, #tpu.memory_space<vmem>>, vector<128x32xbf16>
    %cst_16 = arith.constant dense<0.000000e+00> : vector<16x32xf32>
    %46 = tpu.matmul %44, %45, %cst_16 {dimension_numbers = #tpu.dot_dimension_numbers<[1], [0], [0], [1], [0, 0, 1, 1], [], []>} : vector<16x128xbf16>, vector<128x32xbf16>, vector<16x32xf32> -> vector<16x32xf32>
    %47 = vector.broadcast %5 : vector<1x32xf32> to vector<16x32xf32>
    %48 = arith.addf %46, %47 : vector<16x32xf32>
    %c0_17 = arith.constant 0 : index
    %c0_18 = arith.constant 0 : index
    %49 = vector.load %arg1[%c0_17, %c0_18] : memref<32x128xbf16, #tpu.memory_space<vmem>>, vector<32x128xbf16>
    %cst_19 = arith.constant dense<0.000000e+00> : vector<16x128xf32>
    %50 = tpu.matmul %26, %49, %cst_19 {dimension_numbers = #tpu.dot_dimension_numbers<[1], [0], [0], [1], [0, 0, 1, 1], [], []>} : vector<16x32xbf16>, vector<32x128xbf16>, vector<16x128xf32> -> vector<16x128xf32>
    %c0_20 = arith.constant 0 : index
    %c0_21 = arith.constant 0 : index
    %51 = vector.load %arg5[%c0_20, %c0_21] : memref<48x128xf32, #tpu.memory_space<vmem>>, vector<48x128xf32>
    %52 = vector.extract_strided_slice %51 {offsets = [0, 0], sizes = [16, 128], strides = [1, 1]} : vector<48x128xf32> to vector<16x128xf32>
    %53 = vector.extract_strided_slice %51 {offsets = [16, 0], sizes = [16, 128], strides = [1, 1]} : vector<48x128xf32> to vector<16x128xf32>
    %54 = vector.extract_strided_slice %51 {offsets = [32, 0], sizes = [16, 128], strides = [1, 1]} : vector<48x128xf32> to vector<16x128xf32>
    %c127_i32 = arith.constant 127 : i32
    %55 = tpu.dynamic_rotate %50 by %c127_i32 dim 1 : vector<16x128xf32>, i32 -> vector<16x128xf32>
    %c1_i32 = arith.constant 1 : i32
    %56 = tpu.dynamic_rotate %50 by %c1_i32 dim 1 : vector<16x128xf32>, i32 -> vector<16x128xf32>
    %57 = arith.mulf %50, %52 : vector<16x128xf32>
    %58 = arith.mulf %55, %53 : vector<16x128xf32>
    %59 = arith.addf %57, %58 : vector<16x128xf32>
    %60 = arith.mulf %56, %54 : vector<16x128xf32>
    %61 = arith.addf %59, %60 : vector<16x128xf32>
    %62 = vector.extract_strided_slice %61 {offsets = [0, 0], sizes = [16, 8], strides = [1, 1]} : vector<16x128xf32> to vector<16x8xf32>
    %63 = vector.extract_strided_slice %61 {offsets = [0, 8], sizes = [16, 8], strides = [1, 1]} : vector<16x128xf32> to vector<16x8xf32>
    %64 = vector.extract_strided_slice %61 {offsets = [0, 16], sizes = [16, 8], strides = [1, 1]} : vector<16x128xf32> to vector<16x8xf32>
    %65 = vector.extract_strided_slice %61 {offsets = [0, 24], sizes = [16, 8], strides = [1, 1]} : vector<16x128xf32> to vector<16x8xf32>
    %66 = vector.shape_cast %62 : vector<16x8xf32> to vector<1x16x8xf32>
    %67 = vector.shape_cast %63 : vector<16x8xf32> to vector<1x16x8xf32>
    %68 = vector.shape_cast %64 : vector<16x8xf32> to vector<1x16x8xf32>
    %69 = vector.shape_cast %65 : vector<16x8xf32> to vector<1x16x8xf32>
    %70 = tpu.concatenate %66, %67, %68, %69 in 0 : vector<1x16x8xf32>, vector<1x16x8xf32>, vector<1x16x8xf32>, vector<1x16x8xf32> -> vector<4x16x8xf32>
    %71 = arith.truncf %70 : vector<4x16x8xf32> to vector<4x16x8xbf16>
    %72 = vector.extract_strided_slice %61 {offsets = [0, 32], sizes = [16, 8], strides = [1, 1]} : vector<16x128xf32> to vector<16x8xf32>
    %73 = vector.extract_strided_slice %61 {offsets = [0, 40], sizes = [16, 8], strides = [1, 1]} : vector<16x128xf32> to vector<16x8xf32>
    %74 = vector.extract_strided_slice %61 {offsets = [0, 48], sizes = [16, 8], strides = [1, 1]} : vector<16x128xf32> to vector<16x8xf32>
    %75 = vector.extract_strided_slice %61 {offsets = [0, 56], sizes = [16, 8], strides = [1, 1]} : vector<16x128xf32> to vector<16x8xf32>
    %76 = vector.shape_cast %72 : vector<16x8xf32> to vector<1x16x8xf32>
    %77 = vector.shape_cast %73 : vector<16x8xf32> to vector<1x16x8xf32>
    %78 = vector.shape_cast %74 : vector<16x8xf32> to vector<1x16x8xf32>
    %79 = vector.shape_cast %75 : vector<16x8xf32> to vector<1x16x8xf32>
    %80 = tpu.concatenate %76, %77, %78, %79 in 0 : vector<1x16x8xf32>, vector<1x16x8xf32>, vector<1x16x8xf32>, vector<1x16x8xf32> -> vector<4x16x8xf32>
    %81 = arith.truncf %80 : vector<4x16x8xf32> to vector<4x16x8xbf16>
    %82 = vector.extract_strided_slice %61 {offsets = [0, 64], sizes = [16, 8], strides = [1, 1]} : vector<16x128xf32> to vector<16x8xf32>
    %83 = vector.extract_strided_slice %61 {offsets = [0, 72], sizes = [16, 8], strides = [1, 1]} : vector<16x128xf32> to vector<16x8xf32>
    %84 = vector.extract_strided_slice %61 {offsets = [0, 80], sizes = [16, 8], strides = [1, 1]} : vector<16x128xf32> to vector<16x8xf32>
    %85 = vector.extract_strided_slice %61 {offsets = [0, 88], sizes = [16, 8], strides = [1, 1]} : vector<16x128xf32> to vector<16x8xf32>
    %86 = vector.shape_cast %82 : vector<16x8xf32> to vector<1x16x8xf32>
    %87 = vector.shape_cast %83 : vector<16x8xf32> to vector<1x16x8xf32>
    %88 = vector.shape_cast %84 : vector<16x8xf32> to vector<1x16x8xf32>
    %89 = vector.shape_cast %85 : vector<16x8xf32> to vector<1x16x8xf32>
    %90 = tpu.concatenate %86, %87, %88, %89 in 0 : vector<1x16x8xf32>, vector<1x16x8xf32>, vector<1x16x8xf32>, vector<1x16x8xf32> -> vector<4x16x8xf32>
    %91 = arith.truncf %90 : vector<4x16x8xf32> to vector<4x16x8xbf16>
    %cst_22 = arith.constant dense<0.000000e+00> : vector<4x16x16xf32>
    %92 = tpu.matmul %71, %81, %cst_22 {dimension_numbers = #tpu.dot_dimension_numbers<[2], [2], [1], [1], [0, 0, 0, 1, 1, 1], [0], [0]>} : vector<4x16x8xbf16>, vector<4x16x8xbf16>, vector<4x16x16xf32> -> vector<4x16x16xf32>
    %93 = tpu.iota {dimensions = array<i32: 0>} : vector<16x16xi32>
    %94 = tpu.iota {dimensions = array<i32: 1>} : vector<16x16xi32>
    %c3_i32 = arith.constant 3 : i32
    %95 = vector.broadcast %c3_i32 : i32 to vector<16x16xi32>
    %96 = arith.shrsi %93, %95 : vector<16x16xi32>
    %c3_i32_23 = arith.constant 3 : i32
    %97 = vector.broadcast %c3_i32_23 : i32 to vector<16x16xi32>
    %98 = arith.shrsi %94, %97 : vector<16x16xi32>
    %99 = arith.cmpi eq, %96, %98 : vector<16x16xi32>
    %100 = arith.cmpi sle, %94, %93 : vector<16x16xi32>
    %101 = arith.andi %99, %100 : vector<16x16xi1>
    %102 = vector.shape_cast %101 : vector<16x16xi1> to vector<1x16x16xi1>
    %cst_24 = arith.constant -6.550400e+04 : f32
    %103 = vector.shape_cast %102 : vector<1x16x16xi1> to vector<1x16x16xi1>
    %104 = vector.broadcast %103 : vector<1x16x16xi1> to vector<4x16x16xi1>
    %105 = vector.broadcast %cst_24 : f32 to vector<4x16x16xf32>
    %106 = arith.select %104, %92, %105 : vector<4x16x16xi1>, vector<4x16x16xf32>
    %cst_25 = arith.constant 0.353553385 : f32
    %107 = vector.broadcast %cst_25 : f32 to vector<4x16x16xf32>
    %108 = arith.mulf %106, %107 : vector<4x16x16xf32>
    %cst_26 = arith.constant dense<0xFF800000> : vector<4x16xf32>
    %109 = vector.multi_reduction <maximumf>, %108, %cst_26 [2] : vector<4x16x16xf32> to vector<4x16xf32>
    %110 = vector.shape_cast %109 : vector<4x16xf32> to vector<4x16x1xf32>
    %111 = vector.broadcast %110 : vector<4x16x1xf32> to vector<4x16x16xf32>
    %112 = arith.subf %108, %111 : vector<4x16x16xf32>
    %113 = math.exp %112 : vector<4x16x16xf32>
    %cst_27 = arith.constant dense<0.000000e+00> : vector<4x16xf32>
    %114 = vector.multi_reduction <add>, %113, %cst_27 [2] : vector<4x16x16xf32> to vector<4x16xf32>
    %115 = vector.shape_cast %114 : vector<4x16xf32> to vector<4x16x1xf32>
    %116 = tpu.reciprocal %115 {approx = true} : vector<4x16x1xf32> -> vector<4x16x1xf32>
    %117 = arith.mulf %115, %116 : vector<4x16x1xf32>
    %cst_28 = arith.constant 2.000000e+00 : f32
    %118 = vector.broadcast %cst_28 : f32 to vector<4x16x1xf32>
    %119 = arith.subf %118, %117 : vector<4x16x1xf32>
    %120 = arith.mulf %116, %119 : vector<4x16x1xf32>
    %121 = vector.broadcast %120 : vector<4x16x1xf32> to vector<4x16x16xf32>
    %122 = arith.mulf %113, %121 : vector<4x16x16xf32>
    %123 = arith.truncf %122 : vector<4x16x16xf32> to vector<4x16x16xbf16>
    %cst_29 = arith.constant dense<0.000000e+00> : vector<4x16x8xf32>
    %124 = tpu.matmul %123, %91, %cst_29 {dimension_numbers = #tpu.dot_dimension_numbers<[2], [1], [1], [2], [0, 0, 0, 1, 1, 2], [0], [0]>} : vector<4x16x16xbf16>, vector<4x16x8xbf16>, vector<4x16x8xf32> -> vector<4x16x8xf32>
    %125 = vector.extract_strided_slice %124 {offsets = [0, 0, 0], sizes = [1, 16, 8], strides = [1, 1, 1]} : vector<4x16x8xf32> to vector<1x16x8xf32>
    %126 = vector.shape_cast %125 : vector<1x16x8xf32> to vector<16x8xf32>
    %127 = vector.extract_strided_slice %124 {offsets = [1, 0, 0], sizes = [1, 16, 8], strides = [1, 1, 1]} : vector<4x16x8xf32> to vector<1x16x8xf32>
    %128 = vector.shape_cast %127 : vector<1x16x8xf32> to vector<16x8xf32>
    %129 = vector.extract_strided_slice %124 {offsets = [2, 0, 0], sizes = [1, 16, 8], strides = [1, 1, 1]} : vector<4x16x8xf32> to vector<1x16x8xf32>
    %130 = vector.shape_cast %129 : vector<1x16x8xf32> to vector<16x8xf32>
    %131 = vector.extract_strided_slice %124 {offsets = [3, 0, 0], sizes = [1, 16, 8], strides = [1, 1, 1]} : vector<4x16x8xf32> to vector<1x16x8xf32>
    %132 = vector.shape_cast %131 : vector<1x16x8xf32> to vector<16x8xf32>
    %133 = tpu.concatenate %126, %128, %130, %132 in 1 : vector<16x8xf32>, vector<16x8xf32>, vector<16x8xf32>, vector<16x8xf32> -> vector<16x32xf32>
    %134 = arith.truncf %133 : vector<16x32xf32> to vector<16x32xbf16>
    %c0_30 = arith.constant 0 : index
    %c0_31 = arith.constant 0 : index
    %135 = vector.load %arg2[%c0_30, %c0_31] : memref<32x32xbf16, #tpu.memory_space<vmem>>, vector<32x32xbf16>
    %cst_32 = arith.constant dense<0.000000e+00> : vector<16x32xf32>
    %136 = tpu.matmul %134, %135, %cst_32 {dimension_numbers = #tpu.dot_dimension_numbers<[1], [0], [0], [1], [0, 0, 1, 1], [], []>} : vector<16x32xbf16>, vector<32x32xbf16>, vector<16x32xf32> -> vector<16x32xf32>
    %137 = arith.addf %136, %48 : vector<16x32xf32>
    %138 = arith.addf %137, %0 : vector<16x32xf32>
    %c0_33 = arith.constant 0 : index
    %c0_34 = arith.constant 0 : index
    %139 = vector.load %arg7[%c0_33, %c0_34] : memref<16x32xf32, #tpu.memory_space<vmem>>, vector<16x32xf32>
    tpu.vector_store %arg7[%c0_33, %c0_34], %138 {strides = array<i32>} : memref<16x32xf32, #tpu.memory_space<vmem>>, vector<16x32xf32>,
    return
  }
}

</mosaic_0001>

<llo_original>
// kernel: tpu_custom_call.1
$region0: #{tpu_custom_call.1}
  #allocation0 [shape = 'u32[]', space=smem, size = 0x4, offset = 0x4, fixed_abs, tag = 'smem constant byte address 0x4 - core index']
  #allocation1 [shape = 'u32[144,128]{1,0:T(1,128)}', space=vmem, size = 0x12000, scoped, tag = 'internal scratch']
  %s0 = inlined_call_operand.vmem [shape: f32[16,32], index: 0, kind: input, shape index: {}]
  %s1 = inlined_call_operand.vmem [shape: bf16[32,128], index: 1, kind: input, shape index: {}]
  %s2 = inlined_call_operand.hbm [shape: bf16[32,32], index: 2, kind: input, shape index: {}]
  %s3 = inlined_call_operand.hbm [shape: bf16[32,128], index: 3, kind: input, shape index: {}]
  %s4 = inlined_call_operand.vmem [shape: bf16[128,32], index: 4, kind: input, shape index: {}]
  %s5 = inlined_call_operand.vmem [shape: f32[48,128], index: 5, kind: input, shape index: {}]
  %s6 = inlined_call_operand.vmem [shape: f32[4,128], index: 6, kind: input, shape index: {}]
  %s7 = inlined_call_operand.hbm [shape: f32[16,32], index: 7, kind: output, shape index: {}]
  %s8 = sld [smem:[#allocation0]]
  $region46: #{tpu_custom_call.1} parent=0
    _
  %s10 = ssub.s32 1, %s8
  %s11 = scalar_select 0, %s10, %s8
  $region1: #{tpu_custom_call.1} parent=0
    #allocation2 [shape = 'u8[8192]{0}', space=vmem, size = 0x2000, scoped, tag = 'input window, operand 2, single buffered']
    #allocation3 [shape = 's32[1]{0}', space=sflag, size = 0x4, scoped, tag = 'scoped memory for tpu_custom_call.1']
    #allocation4 [shape = 's32[1]{0}', space=sflag, size = 0x4, scoped, tag = 'scoped memory for tpu_custom_call.1']
    #allocation5 [shape = 'u8[8192]{0}', space=vmem, size = 0x2000, scoped, tag = 'input window, operand 3, single buffered']
    #allocation6 [shape = 's32[1]{0}', space=sflag, size = 0x4, scoped, tag = 'scoped memory for tpu_custom_call.1']
    #allocation7 [shape = 'u8[8192]{0}', space=vmem, size = 0x2000, scoped, tag = 'output window, operand 0, single buffered']
    %12 = vsyncpa [#allocation3], 0
    %13 = vsyncpa [#allocation6], 0
    %14 = vsyncpa [#allocation4], 0
    // Predicated region
    $region2: #{tpu_custom_call.1} parent=1 // pred_check
      _
    $region3: #{tpu_custom_call.1} parent=1 // pred_check_branch
      %16 = sbr.rel (0) target = $region5
    $region4: #{tpu_custom_call.1} parent=1 // pred_region
      _
    $region5: #{tpu_custom_call.1} parent=1 // pred_fallthru
      _
    // Predicated region
    $region6: #{tpu_custom_call.1} parent=1 // pred_check
      _
    $region7: #{tpu_custom_call.1} parent=1 // pred_check_branch
      %18 = sbr.rel (0) target = $region9
    $region8: #{tpu_custom_call.1} parent=1 // pred_region
      _
    $region9: #{tpu_custom_call.1} parent=1 // pred_fallthru
      _
    // Predicated region
    $region10: #{tpu_custom_call.1} parent=1 // pred_check
      _
    $region11: #{tpu_custom_call.1} parent=1 // pred_check_branch
      %20 = sbr.rel (0) target = $region13
    $region12: #{tpu_custom_call.1} parent=1 // pred_region
      %s22 = ssub.s32 256, 256
      %23 = vsyncadd [#allocation3], %s22
      %s24 = sshll.u32 [#allocation2], 4
      %s25 = int_to_ptr.vmem [resolvable:$true] %s24
      %30 = dma.hbm_to_vmem [thread:$0]  %s2, 256, %s25, [#allocation3], 64, 64, 4
    $region13: #{tpu_custom_call.1} parent=1 // pred_fallthru
      _
    // Predicated region
    $region14: #{tpu_custom_call.1} parent=1 // pred_check
      _
    $region15: #{tpu_custom_call.1} parent=1 // pred_check_branch
      %32 = sbr.rel (0) target = $region17
    $region16: #{tpu_custom_call.1} parent=1 // pred_region
      %s34 = ssub.s32 256, 256
      %35 = vsyncadd [#allocation6], %s34
      %s36 = sshll.u32 [#allocation5], 4
      %s37 = int_to_ptr.vmem [resolvable:$true] %s36
      %42 = dma.hbm_to_vmem [thread:$0]  %s3, 256, %s37, [#allocation6], 64, 64, 4
    $region17: #{tpu_custom_call.1} parent=1 // pred_fallthru
      _
    // Predicated region
    $region18: #{tpu_custom_call.1} parent=1 // pred_check
      _
    $region19: #{tpu_custom_call.1} parent=1 // pred_check_branch
      %44 = sbr.rel (0) target = $region21
    $region20: #{tpu_custom_call.1} parent=1 // pred_region
      _
    $region21: #{tpu_custom_call.1} parent=1 // pred_fallthru
      _
    // Predicated region
    $region22: #{tpu_custom_call.1} parent=1 // pred_check
      _
    $region23: #{tpu_custom_call.1} parent=1 // pred_check_branch
      %46 = sbr.rel (0) target = $region25
    $region24: #{tpu_custom_call.1} parent=1 // pred_region
      _
    $region25: #{tpu_custom_call.1} parent=1 // pred_fallthru
      _
    // Predicated region
    $region26: #{tpu_custom_call.1} parent=1 // pred_check
      _
    $region27: #{tpu_custom_call.1} parent=1 // pred_check_branch
      %48 = sbr.rel (0) target = $region29
    $region28: #{tpu_custom_call.1} parent=1 // pred_region
      _
    $region29: #{tpu_custom_call.1} parent=1 // pred_fallthru
      _
    // Predicated region
    $region30: #{tpu_custom_call.1} parent=1 // pred_check
      _
    $region31: #{tpu_custom_call.1} parent=1 // pred_check_branch
      %50 = sbr.rel (0) target = $region33
    $region32: #{tpu_custom_call.1} parent=1 // pred_region
      %51 = dma.done [#allocation3], 256
    $region33: #{tpu_custom_call.1} parent=1 // pred_fallthru
      _
    // Predicated region
    $region34: #{tpu_custom_call.1} parent=1 // pred_check
      _
    $region35: #{tpu_custom_call.1} parent=1 // pred_check_branch
      %53 = sbr.rel (0) target = $region37
    $region36: #{tpu_custom_call.1} parent=1 // pred_region
      %54 = dma.done [#allocation6], 256
    $region37: #{tpu_custom_call.1} parent=1 // pred_fallthru
      _
    %v56 = vld [vmem:[%s0] sm:$0xff]
    %v57 = vld [vmem:[%s0 + $0x8] sm:$0xff]
    %v58 = vld [vmem:[%s6] sm:$0xf]
    %vm59 = vcmask 261120
    %v60 = vsel %vm59, %v56, 0.0
    %61 = vadd.xlane.f32.xlu0 %v60
    %v62 = vpop.xlane.xlu0 %61
    %v63 = vsel %vm59, %v57, 0.0
    %64 = vadd.xlane.f32.xlu0 %v63
    %v65 = vpop.xlane.xlu0 %64
    %v66 = vrcp.pop 32.0
    %v67 = vmul.f32 %v62, %v66
    %v68 = vmul.f32 %v65, %v66
    %v69 = vsub.f32 %v56, %v67
    %v70 = vsub.f32 %v57, %v68
    %v71 = vmul.f32 %v69, %v69
    %v72 = vmul.f32 %v70, %v70
    %v73 = vsel %vm59, %v71, 0.0
    %74 = vadd.xlane.f32.xlu0 %v73
    %v75 = vpop.xlane.xlu0 %74
    %v76 = vsel %vm59, %v72, 0.0
    %77 = vadd.xlane.f32.xlu0 %v76
    %v78 = vpop.xlane.xlu0 %77
    %v79 = vmul.f32 %v75, %v66
    %v80 = vmul.f32 %v78, %v66
    %v81 = vadd.f32 %v79, 1e-05
    %v82 = vadd.f32 %v80, 1e-05
    %v83 = vrsqrt.pop %v81
    %v84 = vrsqrt.pop %v82
    %v85 = vmul.f32 %v69, %v83
    %v86 = vmul.f32 %v70, %v84
    %v87 = vlaneseq
    %v88 = vshrl.u32 %v87, 7
    %v89 = vsub.s32 1, %v88
    %v90 = vrot.slane %v58, %v89
    %v91 = vmul.f32 %v85, %v90
    %v92 = vmul.f32 %v86, %v90
    %v93 = vlaneseq
    %v94 = vshrl.u32 %v93, 7
    %v95 = vsub.s32 2, %v94
    %v96 = vrot.slane %v58, %v95
    %v97 = vadd.f32 %v91, %v96
    %v98 = vadd.f32 %v92, %v96
    %v99 = vpack.c.bf16 %v98, %v97
    %v100 = vld [vmem:[#allocation5] sm:$0xf]
    %v101 = vld [vmem:[#allocation5 + $0x4] sm:$0xf]
    %v102 = vld [vmem:[#allocation5 + $0x8] sm:$0xf]
    %v103 = vld [vmem:[#allocation5 + $0xc] sm:$0xf]
    %v104 = vlaneseq
    %v105 = vshrl.u32 %v104, 7
    %v106 = vsub.s32 0, %v105
    %v107 = vrot.slane %v58, %v106
    %v112 = vunpack.c.l.b16 %v100
    %v113 = vunpack.c.l.b16 %v101
    %v114 = vunpack.c.l.b16 %v102
    %v115 = vunpack.c.l.b16 %v103
    %v116 = vpack.c.b16 %v113, %v112
    %v117 = vpack.c.b16 %v115, %v114
    %v121 = vsel %vm59, %v99, 0
    %123 = vmatprep.subr.bf16.mxu0 0
    %124 = vmatpush1.bf16.msra.mxu0 0
    %125 = vmatprep.subr.bf16.mxu0 0
    %126 = vmatpush1.bf16.msra.mxu0 0
    %127 = vmatprep.subr.bf16.mxu0 0
    %128 = vmatpush1.bf16.msra.mxu0 0
    %129 = vmatprep.subr.bf16.mxu0 0
    %130 = vmatpush1.bf16.msra.mxu0 0
    %131 = vmatprep.subr.bf16.mxu0 0
    %132 = vmatpush1.bf16.msra.mxu0 0
    %133 = vmatprep.subr.bf16.mxu0 0
    %134 = vmatpush1.bf16.msra.mxu0 0
    %135 = vmatprep.subr.bf16.mxu0 0
    %136 = vmatpush1.bf16.msra.mxu0 %v117
    %137 = vmatprep.subr.bf16.mxu0 0
    %138 = vmatpush1.bf16.msra.mxu0 %v116
    %139 = vmatprep.subr.bf16.mxu0 0
    %140 = vmatpush2.bf16.msra.mxu0 0
    %141 = vmatprep.subr.bf16.mxu0 0
    %142 = vmatpush2.bf16.msra.mxu0 0
    %143 = vmatprep.subr.bf16.mxu0 0
    %144 = vmatpush2.bf16.msra.mxu0 0
    %145 = vmatprep.subr.bf16.mxu0 0
    %146 = vmatpush2.bf16.msra.mxu0 0
    %147 = vmatprep.subr.bf16.mxu0 0
    %148 = vmatpush2.bf16.msra.mxu0 0
    %149 = vmatprep.subr.bf16.mxu0 0
    %150 = vmatpush2.bf16.msra.mxu0 0
    %151 = vmatprep.subr.bf16.mxu0 0
    %152 = vmatpush2.bf16.msra.mxu0 0
    %153 = vmatprep.subr.bf16.mxu0 0
    %154 = vmatpush2.bf16.msra.mxu0 0
    %155 = vmatprep.mubr.bf16.mxu0 0
    %156 = vmatmul.mubr.bf16.gmra.mxu0 %v121
    %v157 = vpop.f32.mrf.mxu0
    %v158 = vadd.f32 %v107, %v157
    %v159 = vpop.f32.mrf.mxu0
    %v160 = vpop.f32.mrf.mxu0
    %v161 = vadd.f32 %v107, %v160
    %v162 = vpop.f32.mrf.mxu0
    %163 = vdwg.mxu0
    %v164 = vmul.f32 %v158, 0.5
    %v165 = vmul.f32 %v161, 0.5
    %v166 = vmul.f32 %v158, 0.044715
    %v167 = vmul.f32 %v161, 0.044715
    %v168 = vmul.f32 %v166, %v158
    %v169 = vmul.f32 %v167, %v161
    %v170 = vmul.f32 %v168, %v158
    %v171 = vmul.f32 %v169, %v161
    %v172 = vadd.f32 %v158, %v170
    %v173 = vadd.f32 %v161, %v171
    %v174 = vmul.f32 %v172, 0.7978846
    %v175 = vmul.f32 %v173, 0.7978846
    %v176 = vtanh.pop %v174
    %v177 = vtanh.pop %v175
    %v178 = vadd.f32 %v176, 1.0
    %v179 = vadd.f32 %v177, 1.0
    %v180 = vmul.f32 %v164, %v178
    %v181 = vmul.f32 %v165, %v179
    %v182 = vpack.c.bf16 %v181, %v180
    %v183 = vld [vmem:[%s4] sm:$0xf]
    %v184 = vld [vmem:[%s4 + $0x4] sm:$0xf]
    %v185 = vld [vmem:[%s4 + $0x8] sm:$0xf]
    %v186 = vld [vmem:[%s4 + $0xc] sm:$0xf]
    %v187 = vld [vmem:[%s4 + $0x10] sm:$0xf]
    %v188 = vld [vmem:[%s4 + $0x14] sm:$0xf]
    %v189 = vld [vmem:[%s4 + $0x18] sm:$0xf]
    %v190 = vld [vmem:[%s4 + $0x1c] sm:$0xf]
    %v191 = vld [vmem:[%s4 + $0x20] sm:$0xf]
    %v192 = vld [vmem:[%s4 + $0x24] sm:$0xf]
    %v193 = vld [vmem:[%s4 + $0x28] sm:$0xf]
    %v194 = vld [vmem:[%s4 + $0x2c] sm:$0xf]
    %v195 = vld [vmem:[%s4 + $0x30] sm:$0xf]
    %v196 = vld [vmem:[%s4 + $0x34] sm:$0xf]
    %v197 = vld [vmem:[%s4 + $0x38] sm:$0xf]
    %v198 = vld [vmem:[%s4 + $0x3c] sm:$0xf]
    %v199 = vlaneseq
    %v200 = vshrl.u32 %v199, 7
    %v201 = vsub.s32 3, %v200
    %v202 = vrot.slane %v58, %v201
    %v219 = vunpack.c.l.b16 %v183
    %v220 = vunpack.c.l.b16 %v184
    %v221 = vunpack.c.l.b16 %v185
    %v222 = vunpack.c.l.b16 %v186
    %v223 = vunpack.c.l.b16 %v187
    %v224 = vunpack.c.l.b16 %v188
    %v225 = vunpack.c.l.b16 %v189
    %v226 = vunpack.c.l.b16 %v190
    %v227 = vunpack.c.l.b16 %v191
    %v228 = vunpack.c.l.b16 %v192
    %v229 = vunpack.c.l.b16 %v193
    %v230 = vunpack.c.l.b16 %v194
    %v231 = vunpack.c.l.b16 %v195
    %v232 = vunpack.c.l.b16 %v196
    %v233 = vunpack.c.l.b16 %v197
    %v234 = vunpack.c.l.b16 %v198
    %v235 = vpack.c.b16 %v220, %v219
    %v236 = vpack.c.b16 %v222, %v221
    %v237 = vpack.c.b16 %v224, %v223
    %v238 = vpack.c.b16 %v226, %v225
    %v239 = vpack.c.b16 %v228, %v227
    %v240 = vpack.c.b16 %v230, %v229
    %v241 = vpack.c.b16 %v232, %v231
    %v242 = vpack.c.b16 %v234, %v233
    %251 = vmatprep.subr.bf16.mxu0 0
    %252 = vmatpush1.bf16.msra.mxu0 %v242
    %253 = vmatprep.subr.bf16.mxu0 0
    %254 = vmatpush1.bf16.msra.mxu0 %v241
    %255 = vmatprep.subr.bf16.mxu0 0
    %256 = vmatpush1.bf16.msra.mxu0 %v240
    %257 = vmatprep.subr.bf16.mxu0 0
    %258 = vmatpush1.bf16.msra.mxu0 %v239
    %259 = vmatprep.subr.bf16.mxu0 0
    %260 = vmatpush1.bf16.msra.mxu0 %v238
    %261 = vmatprep.subr.bf16.mxu0 0
    %262 = vmatpush1.bf16.msra.mxu0 %v237
    %263 = vmatprep.subr.bf16.mxu0 0
    %264 = vmatpush1.bf16.msra.mxu0 %v236
    %265 = vmatprep.subr.bf16.mxu0 0
    %266 = vmatpush1.bf16.msra.mxu0 %v235
    %267 = vmatprep.subr.bf16.mxu0 0
    %268 = vmatpush2.bf16.msra.mxu0 0
    %269 = vmatprep.subr.bf16.mxu0 0
    %270 = vmatpush2.bf16.msra.mxu0 0
    %271 = vmatprep.subr.bf16.mxu0 0
    %272 = vmatpush2.bf16.msra.mxu0 0
    %273 = vmatprep.subr.bf16.mxu0 0
    %274 = vmatpush2.bf16.msra.mxu0 0
    %275 = vmatprep.subr.bf16.mxu0 0
    %276 = vmatpush2.bf16.msra.mxu0 0
    %277 = vmatprep.subr.bf16.mxu0 0
    %278 = vmatpush2.bf16.msra.mxu0 0
    %279 = vmatprep.subr.bf16.mxu0 0
    %280 = vmatpush2.bf16.msra.mxu0 0
    %281 = vmatprep.subr.bf16.mxu0 0
    %282 = vmatpush2.bf16.msra.mxu0 0
    %283 = vmatprep.mubr.bf16.mxu0 0
    %284 = vmatmul.mubr.bf16.gmra.mxu0 %v182
    %v285 = vpop.f32.mrf.mxu0
    %v286 = vadd.f32 %v202, %v285
    %v287 = vpop.f32.mrf.mxu0
    %v288 = vpop.f32.mrf.mxu0
    %v289 = vadd.f32 %v202, %v288
    %v290 = vpop.f32.mrf.mxu0
    %291 = vdwg.mxu0
    %v292 = vld [vmem:[%s1] sm:$0xf]
    %v293 = vld [vmem:[%s1 + $0x4] sm:$0xf]
    %v294 = vld [vmem:[%s1 + $0x8] sm:$0xf]
    %v295 = vld [vmem:[%s1 + $0xc] sm:$0xf]
    %v300 = vunpack.c.l.b16 %v292
    %v301 = vunpack.c.l.b16 %v293
    %v302 = vunpack.c.l.b16 %v294
    %v303 = vunpack.c.l.b16 %v295
    %v304 = vpack.c.b16 %v301, %v300
    %v305 = vpack.c.b16 %v303, %v302
    %308 = vmatprep.subr.bf16.mxu0 0
    %309 = vmatpush1.bf16.msra.mxu0 0
    %310 = vmatprep.subr.bf16.mxu0 0
    %311 = vmatpush1.bf16.msra.mxu0 0
    %312 = vmatprep.subr.bf16.mxu0 0
    %313 = vmatpush1.bf16.msra.mxu0 0
    %314 = vmatprep.subr.bf16.mxu0 0
    %315 = vmatpush1.bf16.msra.mxu0 0
    %316 = vmatprep.subr.bf16.mxu0 0
    %317 = vmatpush1.bf16.msra.mxu0 0
    %318 = vmatprep.subr.bf16.mxu0 0
    %319 = vmatpush1.bf16.msra.mxu0 0
    %320 = vmatprep.subr.bf16.mxu0 0
    %321 = vmatpush1.bf16.msra.mxu0 %v305
    %322 = vmatprep.subr.bf16.mxu0 0
    %323 = vmatpush1.bf16.msra.mxu0 %v304
    %324 = vmatprep.subr.bf16.mxu0 0
    %325 = vmatpush2.bf16.msra.mxu0 0
    %326 = vmatprep.subr.bf16.mxu0 0
    %327 = vmatpush2.bf16.msra.mxu0 0
    %328 = vmatprep.subr.bf16.mxu0 0
    %329 = vmatpush2.bf16.msra.mxu0 0
    %330 = vmatprep.subr.bf16.mxu0 0
    %331 = vmatpush2.bf16.msra.mxu0 0
    %332 = vmatprep.subr.bf16.mxu0 0
    %333 = vmatpush2.bf16.msra.mxu0 0
    %334 = vmatprep.subr.bf16.mxu0 0
    %335 = vmatpush2.bf16.msra.mxu0 0
    %336 = vmatprep.subr.bf16.mxu0 0
    %337 = vmatpush2.bf16.msra.mxu0 0
    %338 = vmatprep.subr.bf16.mxu0 0
    %339 = vmatpush2.bf16.msra.mxu0 0
    %340 = vmatprep.mubr.bf16.mxu0 0
    %341 = vmatmul.mubr.bf16.gmra.mxu0 %v121
    %v342 = vpop.f32.mrf.mxu0
    %v343 = vadd.f32 0.0, %v342
    %v344 = vpop.f32.mrf.mxu0
    %v345 = vpop.f32.mrf.mxu0
    %v346 = vadd.f32 0.0, %v345
    %v347 = vpop.f32.mrf.mxu0
    %348 = vdwg.mxu0
    %v349 = vld [vmem:[%s5] sm:$0xff]
    %v350 = vld [vmem:[%s5 + $0x8] sm:$0xff]
    %v351 = vld [vmem:[%s5 + $0x10] sm:$0xff]
    %v352 = vld [vmem:[%s5 + $0x18] sm:$0xff]
    %v353 = vld [vmem:[%s5 + $0x20] sm:$0xff]
    %v354 = vld [vmem:[%s5 + $0x28] sm:$0xff]
    %355 = vrot.lane.b32.xlu0 %v343, 127
    %v356 = vpop.permute.xlu0 %355
    %357 = vrot.lane.b32.xlu0 %v346, 127
    %v358 = vpop.permute.xlu0 %357
    %359 = vrot.lane.b32.xlu0 %v343, 1
    %v360 = vpop.permute.xlu0 %359
    %361 = vrot.lane.b32.xlu0 %v346, 1
    %v362 = vpop.permute.xlu0 %361
    %v363 = vmul.f32 %v343, %v349
    %v364 = vmul.f32 %v346, %v350
    %v365 = vmul.f32 %v356, %v351
    %v366 = vmul.f32 %v358, %v352
    %v367 = vadd.f32 %v363, %v365
    %v368 = vadd.f32 %v364, %v366
    %v369 = vmul.f32 %v360, %v353
    %v370 = vmul.f32 %v362, %v354
    %v371 = vadd.f32 %v367, %v369
    %v372 = vadd.f32 %v368, %v370
    %375 = vrot.lane.b32.xlu0 %v371, 120
    %v376 = vpop.permute.xlu0 %375
    %377 = vrot.lane.b32.xlu0 %v372, 120
    %v378 = vpop.permute.xlu0 %377
    %381 = vrot.lane.b32.xlu0 %v371, 112
    %v382 = vpop.permute.xlu0 %381
    %383 = vrot.lane.b32.xlu0 %v372, 112
    %v384 = vpop.permute.xlu0 %383
    %387 = vrot.lane.b32.xlu0 %v371, 104
    %v388 = vpop.permute.xlu0 %387
    %389 = vrot.lane.b32.xlu0 %v372, 104
    %v390 = vpop.permute.xlu0 %389
    %v393 = vpack.c.bf16 %v372, %v371
    %v394 = vpack.c.bf16 %v378, %v376
    %v395 = vpack.c.bf16 %v384, %v382
    %v396 = vpack.c.bf16 %v390, %v388
    %398 = vrot.lane.b32.xlu0 %v393, 96
    %v399 = vpop.permute.xlu0 %398
    %vm400 = vcmask 64512
    %v402 = vsel %vm400, %v393, 0
    %v405 = vsel %vm400, %v399, 0
    %407 = vmatprep.subr.bf16.mxu0 0
    %408 = vmatpush1.bf16.xpose.msra.mxu0 0
    %409 = vmatprep.subr.bf16.mxu0 0
    %410 = vmatpush1.bf16.xpose.msra.mxu0 0
    %411 = vmatprep.subr.bf16.mxu0 0
    %412 = vmatpush1.bf16.xpose.msra.mxu0 0
    %413 = vmatprep.subr.bf16.mxu0 0
    %414 = vmatpush1.bf16.xpose.msra.mxu0 0
    %415 = vmatprep.subr.bf16.mxu0 0
    %416 = vmatpush1.bf16.xpose.msra.mxu0 0
    %417 = vmatprep.subr.bf16.mxu0 0
    %418 = vmatpush1.bf16.xpose.msra.mxu0 0
    %419 = vmatprep.subr.bf16.mxu0 0
    %420 = vmatpush1.bf16.xpose.msra.mxu0 0
    %421 = vmatprep.subr.bf16.mxu0 0
    %422 = vmatpush1.bf16.xpose.msra.mxu0 %v405
    %423 = vmatprep.subr.bf16.mxu0 0
    %424 = vmatpush2.bf16.xpose.msra.mxu0 0
    %425 = vmatprep.subr.bf16.mxu0 0
    %426 = vmatpush2.bf16.xpose.msra.mxu0 0
    %427 = vmatprep.subr.bf16.mxu0 0
    %428 = vmatpush2.bf16.xpose.msra.mxu0 0
    %429 = vmatprep.subr.bf16.mxu0 0
    %430 = vmatpush2.bf16.xpose.msra.mxu0 0
    %431 = vmatprep.subr.bf16.mxu0 0
    %432 = vmatpush2.bf16.xpose.msra.mxu0 0
    %433 = vmatprep.subr.bf16.mxu0 0
    %434 = vmatpush2.bf16.xpose.msra.mxu0 0
    %435 = vmatprep.subr.bf16.mxu0 0
    %436 = vmatpush2.bf16.xpose.msra.mxu0 0
    %437 = vmatprep.subr.bf16.mxu0 0
    %438 = vmatpush2.bf16.xpose.msra.mxu0 0
    %439 = vmatprep.mubr.bf16.mxu0 0
    %440 = vmatmul.mubr.bf16.gmra.mxu0 %v402
    %v441 = vpop.f32.mrf.mxu0
    %v442 = vadd.f32 0.0, %v441
    %v443 = vpop.f32.mrf.mxu0
    %v444 = vpop.f32.mrf.mxu0
    %v445 = vadd.f32 0.0, %v444
    %v446 = vpop.f32.mrf.mxu0
    %447 = vdwg.mxu0
    %449 = vrot.lane.b32.xlu0 %v394, 96
    %v450 = vpop.permute.xlu0 %449
    %v452 = vsel %vm400, %v394, 0
    %v455 = vsel %vm400, %v450, 0
    %457 = vmatprep.subr.bf16.mxu0 0
    %458 = vmatpush1.bf16.xpose.msra.mxu0 0
    %459 = vmatprep.subr.bf16.mxu0 0
    %460 = vmatpush1.bf16.xpose.msra.mxu0 0
    %461 = vmatprep.subr.bf16.mxu0 0
    %462 = vmatpush1.bf16.xpose.msra.mxu0 0
    %463 = vmatprep.subr.bf16.mxu0 0
    %464 = vmatpush1.bf16.xpose.msra.mxu0 0
    %465 = vmatprep.subr.bf16.mxu0 0
    %466 = vmatpush1.bf16.xpose.msra.mxu0 0
    %467 = vmatprep.subr.bf16.mxu0 0
    %468 = vmatpush1.bf16.xpose.msra.mxu0 0
    %469 = vmatprep.subr.bf16.mxu0 0
    %470 = vmatpush1.bf16.xpose.msra.mxu0 0
    %471 = vmatprep.subr.bf16.mxu0 0
    %472 = vmatpush1.bf16.xpose.msra.mxu0 %v455
    %473 = vmatprep.subr.bf16.mxu0 0
    %474 = vmatpush2.bf16.xpose.msra.mxu0 0
    %475 = vmatprep.subr.bf16.mxu0 0
    %476 = vmatpush2.bf16.xpose.msra.mxu0 0
    %477 = vmatprep.subr.bf16.mxu0 0
    %478 = vmatpush2.bf16.xpose.msra.mxu0 0
    %479 = vmatprep.subr.bf16.mxu0 0
    %480 = vmatpush2.bf16.xpose.msra.mxu0 0
    %481 = vmatprep.subr.bf16.mxu0 0
    %482 = vmatpush2.bf16.xpose.msra.mxu0 0
    %483 = vmatprep.subr.bf16.mxu0 0
    %484 = vmatpush2.bf16.xpose.msra.mxu0 0
    %485 = vmatprep.subr.bf16.mxu0 0
    %486 = vmatpush2.bf16.xpose.msra.mxu0 0
    %487 = vmatprep.subr.bf16.mxu0 0
    %488 = vmatpush2.bf16.xpose.msra.mxu0 0
    %489 = vmatprep.mubr.bf16.mxu0 0
    %490 = vmatmul.mubr.bf16.gmra.mxu0 %v452
    %v491 = vpop.f32.mrf.mxu0
    %v492 = vadd.f32 0.0, %v491
    %v493 = vpop.f32.mrf.mxu0
    %v494 = vpop.f32.mrf.mxu0
    %v495 = vadd.f32 0.0, %v494
    %v496 = vpop.f32.mrf.mxu0
    %497 = vdwg.mxu0
    %499 = vrot.lane.b32.xlu0 %v395, 96
    %v500 = vpop.permute.xlu0 %499
    %v502 = vsel %vm400, %v395, 0
    %v505 = vsel %vm400, %v500, 0
    %507 = vmatprep.subr.bf16.mxu0 0
    %508 = vmatpush1.bf16.xpose.msra.mxu0 0
    %509 = vmatprep.subr.bf16.mxu0 0
    %510 = vmatpush1.bf16.xpose.msra.mxu0 0
    %511 = vmatprep.subr.bf16.mxu0 0
    %512 = vmatpush1.bf16.xpose.msra.mxu0 0
    %513 = vmatprep.subr.bf16.mxu0 0
    %514 = vmatpush1.bf16.xpose.msra.mxu0 0
    %515 = vmatprep.subr.bf16.mxu0 0
    %516 = vmatpush1.bf16.xpose.msra.mxu0 0
    %517 = vmatprep.subr.bf16.mxu0 0
    %518 = vmatpush1.bf16.xpose.msra.mxu0 0
    %519 = vmatprep.subr.bf16.mxu0 0
    %520 = vmatpush1.bf16.xpose.msra.mxu0 0
    %521 = vmatprep.subr.bf16.mxu0 0
    %522 = vmatpush1.bf16.xpose.msra.mxu0 %v505
    %523 = vmatprep.subr.bf16.mxu0 0
    %524 = vmatpush2.bf16.xpose.msra.mxu0 0
    %525 = vmatprep.subr.bf16.mxu0 0
    %526 = vmatpush2.bf16.xpose.msra.mxu0 0
    %527 = vmatprep.subr.bf16.mxu0 0
    %528 = vmatpush2.bf16.xpose.msra.mxu0 0
    %529 = vmatprep.subr.bf16.mxu0 0
    %530 = vmatpush2.bf16.xpose.msra.mxu0 0
    %531 = vmatprep.subr.bf16.mxu0 0
    %532 = vmatpush2.bf16.xpose.msra.mxu0 0
    %533 = vmatprep.subr.bf16.mxu0 0
    %534 = vmatpush2.bf16.xpose.msra.mxu0 0
    %535 = vmatprep.subr.bf16.mxu0 0
    %536 = vmatpush2.bf16.xpose.msra.mxu0 0
    %537 = vmatprep.subr.bf16.mxu0 0
    %538 = vmatpush2.bf16.xpose.msra.mxu0 0
    %539 = vmatprep.mubr.bf16.mxu0 0
    %540 = vmatmul.mubr.bf16.gmra.mxu0 %v502
    %v541 = vpop.f32.mrf.mxu0
    %v542 = vadd.f32 0.0, %v541
    %v543 = vpop.f32.mrf.mxu0
    %v544 = vpop.f32.mrf.mxu0
    %v545 = vadd.f32 0.0, %v544
    %v546 = vpop.f32.mrf.mxu0
    %547 = vdwg.mxu0
    %549 = vrot.lane.b32.xlu0 %v396, 96
    %v550 = vpop.permute.xlu0 %549
    %v552 = vsel %vm400, %v396, 0
    %v555 = vsel %vm400, %v550, 0
    %557 = vmatprep.subr.bf16.mxu0 0
    %558 = vmatpush1.bf16.xpose.msra.mxu0 0
    %559 = vmatprep.subr.bf16.mxu0 0
    %560 = vmatpush1.bf16.xpose.msra.mxu0 0
    %561 = vmatprep.subr.bf16.mxu0 0
    %562 = vmatpush1.bf16.xpose.msra.mxu0 0
    %563 = vmatprep.subr.bf16.mxu0 0
    %564 = vmatpush1.bf16.xpose.msra.mxu0 0
    %565 = vmatprep.subr.bf16.mxu0 0
    %566 = vmatpush1.bf16.xpose.msra.mxu0 0
    %567 = vmatprep.subr.bf16.mxu0 0
    %568 = vmatpush1.bf16.xpose.msra.mxu0 0
    %569 = vmatprep.subr.bf16.mxu0 0
    %570 = vmatpush1.bf16.xpose.msra.mxu0 0
    %571 = vmatprep.subr.bf16.mxu0 0
    %572 = vmatpush1.bf16.xpose.msra.mxu0 %v555
    %573 = vmatprep.subr.bf16.mxu0 0
    %574 = vmatpush2.bf16.xpose.msra.mxu0 0
    %575 = vmatprep.subr.bf16.mxu0 0
    %576 = vmatpush2.bf16.xpose.msra.mxu0 0
    %577 = vmatprep.subr.bf16.mxu0 0
    %578 = vmatpush2.bf16.xpose.msra.mxu0 0
    %579 = vmatprep.subr.bf16.mxu0 0
    %580 = vmatpush2.bf16.xpose.msra.mxu0 0
    %581 = vmatprep.subr.bf16.mxu0 0
    %582 = vmatpush2.bf16.xpose.msra.mxu0 0
    %583 = vmatprep.subr.bf16.mxu0 0
    %584 = vmatpush2.bf16.xpose.msra.mxu0 0
    %585 = vmatprep.subr.bf16.mxu0 0
    %586 = vmatpush2.bf16.xpose.msra.mxu0 0
    %587 = vmatprep.subr.bf16.mxu0 0
    %588 = vmatpush2.bf16.xpose.msra.mxu0 0
    %589 = vmatprep.mubr.bf16.mxu0 0
    %590 = vmatmul.mubr.bf16.gmra.mxu0 %v552
    %v591 = vpop.f32.mrf.mxu0
    %v592 = vadd.f32 0.0, %v591
    %v593 = vpop.f32.mrf.mxu0
    %v594 = vpop.f32.mrf.mxu0
    %v595 = vadd.f32 0.0, %v594
    %v596 = vpop.f32.mrf.mxu0
    %597 = vdwg.mxu0
    %v598 = vlaneseq
    %v599 = vshrl.u32 %v598, 7
    %v600 = vadd.s32 %v599, 8
    %v601 = vlaneseq
    %v602 = vand.u32 %v601, 127
    %v603 = vshra.s32 %v599, 3
    %v604 = vshra.s32 %v600, 3
    %v605 = vshra.s32 %v602, 3
    %vm606 = vcmp.eq.s32.totalorder %v603, %v605
    %vm607 = vcmp.eq.s32.totalorder %v604, %v605
    %vm608 = vcmp.le.s32.totalorder %v602, %v599
    %vm609 = vcmp.le.s32.totalorder %v602, %v600
    %vm610 = vmand %vm606, %vm608
    %vm611 = vmand %vm607, %vm609
    %v612 = vsel %vm610, 1, 0
    %v613 = vsel %vm611, 1, 0
    %vm614 = vcmp.eq.s32.totalorder %v612, 1
    %vm615 = vcmp.eq.s32.totalorder %v613, 1
    %v616 = vsel %vm614, %v442, -65504.0
    %v617 = vsel %vm615, %v445, -65504.0
    %v618 = vsel %vm614, %v492, -65504.0
    %v619 = vsel %vm615, %v495, -65504.0
    %v620 = vsel %vm614, %v542, -65504.0
    %v621 = vsel %vm615, %v545, -65504.0
    %v622 = vsel %vm614, %v592, -65504.0
    %v623 = vsel %vm615, %v595, -65504.0
    %v624 = vmul.f32 %v616, 0.35355338
    %v625 = vmul.f32 %v617, 0.35355338
    %v626 = vmul.f32 %v618, 0.35355338
    %v627 = vmul.f32 %v619, 0.35355338
    %v628 = vmul.f32 %v620, 0.35355338
    %v629 = vmul.f32 %v621, 0.35355338
    %v630 = vmul.f32 %v622, 0.35355338
    %v631 = vmul.f32 %v623, 0.35355338
    %vm632 = vcmask 130048
    %v633 = vsel %vm632, %v624, -inf
    %634 = vmax.xlane.f32.xlu0 %v633
    %v635 = vpop.xlane.xlu0 %634
    %v636 = vsel %vm632, %v625, -inf
    %637 = vmax.xlane.f32.xlu0 %v636
    %v638 = vpop.xlane.xlu0 %637
    %v639 = vsel %vm632, %v626, -inf
    %640 = vmax.xlane.f32.xlu0 %v639
    %v641 = vpop.xlane.xlu0 %640
    %v642 = vsel %vm632, %v627, -inf
    %643 = vmax.xlane.f32.xlu0 %v642
    %v644 = vpop.xlane.xlu0 %643
    %v645 = vsel %vm632, %v628, -inf
    %646 = vmax.xlane.f32.xlu0 %v645
    %v647 = vpop.xlane.xlu0 %646
    %v648 = vsel %vm632, %v629, -inf
    %649 = vmax.xlane.f32.xlu0 %v648
    %v650 = vpop.xlane.xlu0 %649
    %v651 = vsel %vm632, %v630, -inf
    %652 = vmax.xlane.f32.xlu0 %v651
    %v653 = vpop.xlane.xlu0 %652
    %v654 = vsel %vm632, %v631, -inf
    %655 = vmax.xlane.f32.xlu0 %v654
    %v656 = vpop.xlane.xlu0 %655
    %v657 = vsub.f32 %v624, %v635
    %v658 = vsub.f32 %v625, %v638
    %v659 = vsub.f32 %v626, %v641
    %v660 = vsub.f32 %v627, %v644
    %v661 = vsub.f32 %v628, %v647
    %v662 = vsub.f32 %v629, %v650
    %v663 = vsub.f32 %v630, %v653
    %v664 = vsub.f32 %v631, %v656
    %v665 = vmul.f32 %v657, 1.442695
    %v666 = vpow.pop %v665
    %v667 = vmul.f32 %v658, 1.442695
    %v668 = vpow.pop %v667
    %v669 = vmul.f32 %v659, 1.442695
    %v670 = vpow.pop %v669
    %v671 = vmul.f32 %v660, 1.442695
    %v672 = vpow.pop %v671
    %v673 = vmul.f32 %v661, 1.442695
    %v674 = vpow.pop %v673
    %v675 = vmul.f32 %v662, 1.442695
    %v676 = vpow.pop %v675
    %v677 = vmul.f32 %v663, 1.442695
    %v678 = vpow.pop %v677
    %v679 = vmul.f32 %v664, 1.442695
    %v680 = vpow.pop %v679
    %v681 = vsel %vm632, %v666, 0.0
    %682 = vadd.xlane.f32.xlu0 %v681
    %v683 = vpop.xlane.xlu0 %682
    %v684 = vsel %vm632, %v668, 0.0
    %685 = vadd.xlane.f32.xlu0 %v684
    %v686 = vpop.xlane.xlu0 %685
    %v687 = vsel %vm632, %v670, 0.0
    %688 = vadd.xlane.f32.xlu0 %v687
    %v689 = vpop.xlane.xlu0 %688
    %v690 = vsel %vm632, %v672, 0.0
    %691 = vadd.xlane.f32.xlu0 %v690
    %v692 = vpop.xlane.xlu0 %691
    %v693 = vsel %vm632, %v674, 0.0
    %694 = vadd.xlane.f32.xlu0 %v693
    %v695 = vpop.xlane.xlu0 %694
    %v696 = vsel %vm632, %v676, 0.0
    %697 = vadd.xlane.f32.xlu0 %v696
    %v698 = vpop.xlane.xlu0 %697
    %v699 = vsel %vm632, %v678, 0.0
    %700 = vadd.xlane.f32.xlu0 %v699
    %v701 = vpop.xlane.xlu0 %700
    %v702 = vsel %vm632, %v680, 0.0
    %703 = vadd.xlane.f32.xlu0 %v702
    %v704 = vpop.xlane.xlu0 %703
    %v705 = vrcp.pop %v683
    %v706 = vrcp.pop %v686
    %v707 = vrcp.pop %v689
    %v708 = vrcp.pop %v692
    %v709 = vrcp.pop %v695
    %v710 = vrcp.pop %v698
    %v711 = vrcp.pop %v701
    %v712 = vrcp.pop %v704
    %v713 = vmul.f32 %v683, %v705
    %v714 = vmul.f32 %v686, %v706
    %v715 = vmul.f32 %v689, %v707
    %v716 = vmul.f32 %v692, %v708
    %v717 = vmul.f32 %v695, %v709
    %v718 = vmul.f32 %v698, %v710
    %v719 = vmul.f32 %v701, %v711
    %v720 = vmul.f32 %v704, %v712
    %v721 = vsub.f32 2.0, %v713
    %v722 = vsub.f32 2.0, %v714
    %v723 = vsub.f32 2.0, %v715
    %v724 = vsub.f32 2.0, %v716
    %v725 = vsub.f32 2.0, %v717
    %v726 = vsub.f32 2.0, %v718
    %v727 = vsub.f32 2.0, %v719
    %v728 = vsub.f32 2.0, %v720
    %v729 = vmul.f32 %v705, %v721
    %v730 = vmul.f32 %v706, %v722
    %v731 = vmul.f32 %v707, %v723
    %v732 = vmul.f32 %v708, %v724
    %v733 = vmul.f32 %v709, %v725
    %v734 = vmul.f32 %v710, %v726
    %v735 = vmul.f32 %v711, %v727
    %v736 = vmul.f32 %v712, %v728
    %v737 = vmul.f32 %v666, %v729
    %v738 = vmul.f32 %v668, %v730
    %v739 = vmul.f32 %v670, %v731
    %v740 = vmul.f32 %v672, %v732
    %v741 = vmul.f32 %v674, %v733
    %v742 = vmul.f32 %v676, %v734
    %v743 = vmul.f32 %v678, %v735
    %v744 = vmul.f32 %v680, %v736
    %v745 = vpack.c.bf16 %v738, %v737
    %v746 = vpack.c.bf16 %v740, %v739
    %v747 = vpack.c.bf16 %v742, %v741
    %v748 = vpack.c.bf16 %v744, %v743
    %749 = vrot.lane.b32.xlu0 %v393, 64
    %v750 = vpop.permute.xlu0 %749
    %v753 = vsel %vm632, %v745, 0
    %755 = vmatprep.subr.bf16.mxu0 0
    %756 = vmatpush1.bf16.msra.mxu0 0
    %757 = vmatprep.subr.bf16.mxu0 0
    %758 = vmatpush1.bf16.msra.mxu0 0
    %759 = vmatprep.subr.bf16.mxu0 0
    %760 = vmatpush1.bf16.msra.mxu0 0
    %761 = vmatprep.subr.bf16.mxu0 0
    %762 = vmatpush1.bf16.msra.mxu0 0
    %763 = vmatprep.subr.bf16.mxu0 0
    %764 = vmatpush1.bf16.msra.mxu0 0
    %765 = vmatprep.subr.bf16.mxu0 0
    %766 = vmatpush1.bf16.msra.mxu0 0
    %767 = vmatprep.subr.bf16.mxu0 0
    %768 = vmatpush1.bf16.msra.mxu0 0
    %769 = vmatprep.subr.bf16.mxu0 0
    %770 = vmatpush1.bf16.msra.mxu0 %v750
    %771 = vmatprep.subr.bf16.mxu0 0
    %772 = vmatpush2.bf16.msra.mxu0 0
    %773 = vmatprep.subr.bf16.mxu0 0
    %774 = vmatpush2.bf16.msra.mxu0 0
    %775 = vmatprep.subr.bf16.mxu0 0
    %776 = vmatpush2.bf16.msra.mxu0 0
    %777 = vmatprep.subr.bf16.mxu0 0
    %778 = vmatpush2.bf16.msra.mxu0 0
    %779 = vmatprep.subr.bf16.mxu0 0
    %780 = vmatpush2.bf16.msra.mxu0 0
    %781 = vmatprep.subr.bf16.mxu0 0
    %782 = vmatpush2.bf16.msra.mxu0 0
    %783 = vmatprep.subr.bf16.mxu0 0
    %784 = vmatpush2.bf16.msra.mxu0 0
    %785 = vmatprep.subr.bf16.mxu0 0
    %786 = vmatpush2.bf16.msra.mxu0 0
    %787 = vmatprep.mubr.bf16.mxu0 0
    %788 = vmatmul.mubr.bf16.gmra.mxu0 %v753
    %v789 = vpop.f32.mrf.mxu0
    %v790 = vadd.f32 0.0, %v789
    %v791 = vpop.f32.mrf.mxu0
    %v792 = vpop.f32.mrf.mxu0
    %v793 = vadd.f32 0.0, %v792
    %v794 = vpop.f32.mrf.mxu0
    %795 = vdwg.mxu0
    %796 = vrot.lane.b32.xlu0 %v394, 64
    %v797 = vpop.permute.xlu0 %796
    %v800 = vsel %vm632, %v746, 0
    %802 = vmatprep.subr.bf16.mxu0 0
    %803 = vmatpush1.bf16.msra.mxu0 0
    %804 = vmatprep.subr.bf16.mxu0 0
    %805 = vmatpush1.bf16.msra.mxu0 0
    %806 = vmatprep.subr.bf16.mxu0 0
    %807 = vmatpush1.bf16.msra.mxu0 0
    %808 = vmatprep.subr.bf16.mxu0 0
    %809 = vmatpush1.bf16.msra.mxu0 0
    %810 = vmatprep.subr.bf16.mxu0 0
    %811 = vmatpush1.bf16.msra.mxu0 0
    %812 = vmatprep.subr.bf16.mxu0 0
    %813 = vmatpush1.bf16.msra.mxu0 0
    %814 = vmatprep.subr.bf16.mxu0 0
    %815 = vmatpush1.bf16.msra.mxu0 0
    %816 = vmatprep.subr.bf16.mxu0 0
    %817 = vmatpush1.bf16.msra.mxu0 %v797
    %818 = vmatprep.subr.bf16.mxu0 0
    %819 = vmatpush2.bf16.msra.mxu0 0
    %820 = vmatprep.subr.bf16.mxu0 0
    %821 = vmatpush2.bf16.msra.mxu0 0
    %822 = vmatprep.subr.bf16.mxu0 0
    %823 = vmatpush2.bf16.msra.mxu0 0
    %824 = vmatprep.subr.bf16.mxu0 0
    %825 = vmatpush2.bf16.msra.mxu0 0
    %826 = vmatprep.subr.bf16.mxu0 0
    %827 = vmatpush2.bf16.msra.mxu0 0
    %828 = vmatprep.subr.bf16.mxu0 0
    %829 = vmatpush2.bf16.msra.mxu0 0
    %830 = vmatprep.subr.bf16.mxu0 0
    %831 = vmatpush2.bf16.msra.mxu0 0
    %832 = vmatprep.subr.bf16.mxu0 0
    %833 = vmatpush2.bf16.msra.mxu0 0
    %834 = vmatprep.mubr.bf16.mxu0 0
    %835 = vmatmul.mubr.bf16.gmra.mxu0 %v800
    %v836 = vpop.f32.mrf.mxu0
    %v837 = vadd.f32 0.0, %v836
    %v838 = vpop.f32.mrf.mxu0
    %v839 = vpop.f32.mrf.mxu0
    %v840 = vadd.f32 0.0, %v839
    %v841 = vpop.f32.mrf.mxu0
    %842 = vdwg.mxu0
    %843 = vrot.lane.b32.xlu0 %v395, 64
    %v844 = vpop.permute.xlu0 %843
    %v847 = vsel %vm632, %v747, 0
    %849 = vmatprep.subr.bf16.mxu0 0
    %850 = vmatpush1.bf16.msra.mxu0 0
    %851 = vmatprep.subr.bf16.mxu0 0
    %852 = vmatpush1.bf16.msra.mxu0 0
    %853 = vmatprep.subr.bf16.mxu0 0
    %854 = vmatpush1.bf16.msra.mxu0 0
    %855 = vmatprep.subr.bf16.mxu0 0
    %856 = vmatpush1.bf16.msra.mxu0 0
    %857 = vmatprep.subr.bf16.mxu0 0
    %858 = vmatpush1.bf16.msra.mxu0 0
    %859 = vmatprep.subr.bf16.mxu0 0
    %860 = vmatpush1.bf16.msra.mxu0 0
    %861 = vmatprep.subr.bf16.mxu0 0
    %862 = vmatpush1.bf16.msra.mxu0 0
    %863 = vmatprep.subr.bf16.mxu0 0
    %864 = vmatpush1.bf16.msra.mxu0 %v844
    %865 = vmatprep.subr.bf16.mxu0 0
    %866 = vmatpush2.bf16.msra.mxu0 0
    %867 = vmatprep.subr.bf16.mxu0 0
    %868 = vmatpush2.bf16.msra.mxu0 0
    %869 = vmatprep.subr.bf16.mxu0 0
    %870 = vmatpush2.bf16.msra.mxu0 0
    %871 = vmatprep.subr.bf16.mxu0 0
    %872 = vmatpush2.bf16.msra.mxu0 0
    %873 = vmatprep.subr.bf16.mxu0 0
    %874 = vmatpush2.bf16.msra.mxu0 0
    %875 = vmatprep.subr.bf16.mxu0 0
    %876 = vmatpush2.bf16.msra.mxu0 0
    %877 = vmatprep.subr.bf16.mxu0 0
    %878 = vmatpush2.bf16.msra.mxu0 0
    %879 = vmatprep.subr.bf16.mxu0 0
    %880 = vmatpush2.bf16.msra.mxu0 0
    %881 = vmatprep.mubr.bf16.mxu0 0
    %882 = vmatmul.mubr.bf16.gmra.mxu0 %v847
    %v883 = vpop.f32.mrf.mxu0
    %v884 = vadd.f32 0.0, %v883
    %v885 = vpop.f32.mrf.mxu0
    %v886 = vpop.f32.mrf.mxu0
    %v887 = vadd.f32 0.0, %v886
    %v888 = vpop.f32.mrf.mxu0
    %889 = vdwg.mxu0
    %890 = vrot.lane.b32.xlu0 %v396, 64
    %v891 = vpop.permute.xlu0 %890
    %v894 = vsel %vm632, %v748, 0
    %896 = vmatprep.subr.bf16.mxu0 0
    %897 = vmatpush1.bf16.msra.mxu0 0
    %898 = vmatprep.subr.bf16.mxu0 0
    %899 = vmatpush1.bf16.msra.mxu0 0
    %900 = vmatprep.subr.bf16.mxu0 0
    %901 = vmatpush1.bf16.msra.mxu0 0
    %902 = vmatprep.subr.bf16.mxu0 0
    %903 = vmatpush1.bf16.msra.mxu0 0
    %904 = vmatprep.subr.bf16.mxu0 0
    %905 = vmatpush1.bf16.msra.mxu0 0
    %906 = vmatprep.subr.bf16.mxu0 0
    %907 = vmatpush1.bf16.msra.mxu0 0
    %908 = vmatprep.subr.bf16.mxu0 0
    %909 = vmatpush1.bf16.msra.mxu0 0
    %910 = vmatprep.subr.bf16.mxu0 0
    %911 = vmatpush1.bf16.msra.mxu0 %v891
    %912 = vmatprep.subr.bf16.mxu0 0
    %913 = vmatpush2.bf16.msra.mxu0 0
    %914 = vmatprep.subr.bf16.mxu0 0
    %915 = vmatpush2.bf16.msra.mxu0 0
    %916 = vmatprep.subr.bf16.mxu0 0
    %917 = vmatpush2.bf16.msra.mxu0 0
    %918 = vmatprep.subr.bf16.mxu0 0
    %919 = vmatpush2.bf16.msra.mxu0 0
    %920 = vmatprep.subr.bf16.mxu0 0
    %921 = vmatpush2.bf16.msra.mxu0 0
    %922 = vmatprep.subr.bf16.mxu0 0
    %923 = vmatpush2.bf16.msra.mxu0 0
    %924 = vmatprep.subr.bf16.mxu0 0
    %925 = vmatpush2.bf16.msra.mxu0 0
    %926 = vmatprep.subr.bf16.mxu0 0
    %927 = vmatpush2.bf16.msra.mxu0 0
    %928 = vmatprep.mubr.bf16.mxu0 0
    %929 = vmatmul.mubr.bf16.gmra.mxu0 %v894
    %v930 = vpop.f32.mrf.mxu0
    %v931 = vadd.f32 0.0, %v930
    %v932 = vpop.f32.mrf.mxu0
    %v933 = vpop.f32.mrf.mxu0
    %v934 = vadd.f32 0.0, %v933
    %v935 = vpop.f32.mrf.mxu0
    %936 = vdwg.mxu0
    %939 = vrot.lane.b32.xlu0 %v837, 8
    %v940 = vpop.permute.xlu0 %939
    %941 = vrot.lane.b32.xlu0 %v840, 8
    %v942 = vpop.permute.xlu0 %941
    %947 = vrot.lane.b32.xlu0 %v884, 16
    %v948 = vpop.permute.xlu0 %947
    %949 = vrot.lane.b32.xlu0 %v887, 16
    %v950 = vpop.permute.xlu0 %949
    %955 = vrot.lane.b32.xlu0 %v931, 24
    %v956 = vpop.permute.xlu0 %955
    %957 = vrot.lane.b32.xlu0 %v934, 24
    %v958 = vpop.permute.xlu0 %957
    %v961 = vsel %vm400, %v790, %v940
    %v962 = vsel %vm400, %v793, %v942
    %v963 = vsel %vm632, %v961, %v948
    %v964 = vsel %vm632, %v962, %v950
    %vm965 = vcmask 195584
    %v966 = vsel %vm965, %v963, %v956
    %v967 = vsel %vm965, %v964, %v958
    %v968 = vpack.c.bf16 %v967, %v966
    %v969 = vld [vmem:[#allocation2] sm:$0xf]
    %v970 = vld [vmem:[#allocation2 + $0x4] sm:$0xf]
    %v971 = vld [vmem:[#allocation2 + $0x8] sm:$0xf]
    %v972 = vld [vmem:[#allocation2 + $0xc] sm:$0xf]
    %v977 = vunpack.c.l.b16 %v969
    %v978 = vunpack.c.l.b16 %v970
    %v979 = vunpack.c.l.b16 %v971
    %v980 = vunpack.c.l.b16 %v972
    %v981 = vpack.c.b16 %v978, %v977
    %v982 = vpack.c.b16 %v980, %v979
    %v986 = vsel %vm59, %v968, 0
    %988 = vmatprep.subr.bf16.mxu0 0
    %989 = vmatpush1.bf16.msra.mxu0 0
    %990 = vmatprep.subr.bf16.mxu0 0
    %991 = vmatpush1.bf16.msra.mxu0 0
    %992 = vmatprep.subr.bf16.mxu0 0
    %993 = vmatpush1.bf16.msra.mxu0 0
    %994 = vmatprep.subr.bf16.mxu0 0
    %995 = vmatpush1.bf16.msra.mxu0 0
    %996 = vmatprep.subr.bf16.mxu0 0
    %997 = vmatpush1.bf16.msra.mxu0 0
    %998 = vmatprep.subr.bf16.mxu0 0
    %999 = vmatpush1.bf16.msra.mxu0 0
    %1000 = vmatprep.subr.bf16.mxu0 0
    %1001 = vmatpush1.bf16.msra.mxu0 %v982
    %1002 = vmatprep.subr.bf16.mxu0 0
    %1003 = vmatpush1.bf16.msra.mxu0 %v981
    %1004 = vmatprep.subr.bf16.mxu0 0
    %1005 = vmatpush2.bf16.msra.mxu0 0
    %1006 = vmatprep.subr.bf16.mxu0 0
    %1007 = vmatpush2.bf16.msra.mxu0 0
    %1008 = vmatprep.subr.bf16.mxu0 0
    %1009 = vmatpush2.bf16.msra.mxu0 0
    %1010 = vmatprep.subr.bf16.mxu0 0
    %1011 = vmatpush2.bf16.msra.mxu0 0
    %1012 = vmatprep.subr.bf16.mxu0 0
    %1013 = vmatpush2.bf16.msra.mxu0 0
    %1014 = vmatprep.subr.bf16.mxu0 0
    %1015 = vmatpush2.bf16.msra.mxu0 0
    %1016 = vmatprep.subr.bf16.mxu0 0
    %1017 = vmatpush2.bf16.msra.mxu0 0
    %1018 = vmatprep.subr.bf16.mxu0 0
    %1019 = vmatpush2.bf16.msra.mxu0 0
    %1020 = vmatprep.mubr.bf16.mxu0 0
    %1021 = vmatmul.mubr.bf16.gmra.mxu0 %v986
    %v1022 = vpop.f32.mrf.mxu0
    %v1023 = vadd.f32 %v286, %v1022
    %v1024 = vpop.f32.mrf.mxu0
    %v1025 = vpop.f32.mrf.mxu0
    %v1026 = vadd.f32 %v289, %v1025
    %v1027 = vpop.f32.mrf.mxu0
    %1028 = vdwg.mxu0
    %v1029 = vadd.f32 %v1023, %v56
    %v1030 = vadd.f32 %v1026, %v57
    %1031 = vst.msk [vmem:[#allocation7] sm:$0xff] %vm59, %v1029
    %1032 = vst.msk [vmem:[#allocation7 + $0x8] sm:$0xff] %vm59, %v1030
    // Predicated region
    $region38: #{tpu_custom_call.1} parent=1 // pred_check
      _
    $region39: #{tpu_custom_call.1} parent=1 // pred_check_branch
      %1034 = sbr.rel (0) target = $region41
    $region40: #{tpu_custom_call.1} parent=1 // pred_region
      %s1036 = ssub.s32 256, 256
      %1037 = vsyncadd [#allocation4], %s1036
      %s1038 = sshll.u32 [#allocation7], 4
      %s1039 = int_to_ptr.vmem [resolvable:$true] %s1038
      %1044 = dma.vmem_to_hbm [thread:$0]  %s1039, 256, %s7, [#allocation4], 128, 128, 8
    $region41: #{tpu_custom_call.1} parent=1 // pred_fallthru
      _
    // Predicated region
    $region42: #{tpu_custom_call.1} parent=1 // pred_check
      _
    $region43: #{tpu_custom_call.1} parent=1 // pred_check_branch
      %1046 = sbr.rel (0) target = $region45
    $region44: #{tpu_custom_call.1} parent=1 // pred_region
      %1047 = dma.done [#allocation4], 256
    $region45: #{tpu_custom_call.1} parent=1 // pred_fallthru
      _
    %1048 = vsyncpa [#allocation3], 1
    %1049 = vsyncpa [#allocation6], 1
    %1050 = vsyncpa [#allocation4], 1

</llo_original>
